<compile_context>
chip_gen: v7x
topology: tpu7x:2x2x1
jax: 0.10.0
libtpu: 0.0.40
codegen_flags: <defaults>
</compile_context>

<pallas_src>
import jax
import jax.numpy as jnp
from jax.experimental import pallas as pl
from jax.experimental.pallas import tpu as pltpu


# ------------------------------- kernel ------------------------------------
def _posembed_concat_kernel(x_ref, pxy_ref, o_ref):
    # x_ref   : (b_blk, C,   hw_tile)
    # pxy_ref : (1,     2,   hw_tile)   fused (pos_x, pos_y), shared across batch
    # o_ref   : (b_blk, C+2, hw_tile)
    c = x_ref.shape[1]
    b_blk, _, hw_tile = o_ref.shape
    o_ref[:, :c, :] = x_ref[...]
    o_ref[:, c:, :] = jnp.broadcast_to(pxy_ref[...], (b_blk, 2, hw_tile))


# --------------------------- block-size selection ----------------------------
def _choose_blocks(b, c, hw, itemsize, budget_bytes=12 * 1024 * 1024):
    """Pick (b_blk, hw_tile) so the double-buffered working set fits the budget.

    Double-buffered bytes for one block:
        in x : b_blk *  c      * hw_tile
        out  : b_blk * (c + 2) * hw_tile
        pos  : 2               * hw_tile
    """
    def ws(b_blk, hw_tile):
        return 2 * itemsize * hw_tile * (b_blk * (2 * c + 2) + 2)

    if ws(1, hw) > budget_bytes:
        # Tile the flattened spatial dim with lane-dense (multiple-of-128) tiles.
        hw_tile = (budget_bytes // (2 * itemsize * (2 * c + 4))) // 128 * 128
        hw_tile = max(128, min(hw_tile, hw))
        return 1, hw_tile

    # Full HW fits: grow the batch block to amortize per-grid-step overhead.
    b_blk = 1
    while b_blk < b and ws(b_blk + 1, hw) <= budget_bytes:
        b_blk += 1
    return b_blk, hw


# ------------------------------ wrapper -------------------------------------
def posembed_forward(x, pos_xy):
    """x: (B, C, H, W); pos_xy: (1, 2, H*W). Returns (B, C+2, H, W)."""
    b, c, h, w = x.shape
    hw = h * w
    if pos_xy.dtype != x.dtype:
        pos_xy = pos_xy.astype(x.dtype)
    xf = x.reshape(b, c, hw)  # contiguous reshape -> lane-dense last dim

    b_blk, hw_tile = _choose_blocks(b, c, hw, jnp.dtype(x.dtype).itemsize)
    grid = (pl.cdiv(b, b_blk), pl.cdiv(hw, hw_tile))

    out = pl.pallas_call(
        _posembed_concat_kernel,
        out_shape=jax.ShapeDtypeStruct((b, c + 2, hw), x.dtype),
        grid=grid,
        in_specs=[
            pl.BlockSpec((b_blk, c, hw_tile), lambda i, j: (i, 0, j)),
            pl.BlockSpec((1, 2, hw_tile), lambda i, j: (0, 0, j)),  # bcast over batch
        ],
        out_specs=pl.BlockSpec((b_blk, c + 2, hw_tile), lambda i, j: (i, 0, j)),
        compiler_params=pltpu.CompilerParams(
            dimension_semantics=("parallel", "parallel")),
    )(xf, pos_xy)
    return out.reshape(b, c + 2, h, w)


class PosEmbed:
    """JAX/Pallas port of the PyTorch PosEmbed module."""

    def __init__(self, img_size, batch_size, dtype=jnp.float32):
        self.img_size = img_size
        self.h, self.w = img_size
        self.batch_size = batch_size  # interface parity; the kernel broadcasts
        #                               pos over batch instead of materializing
        #                               per-batch copies.

        # Angles + sin/cos in float32 (matches the PyTorch module), cast at the end.
        jx = jnp.arange(self.w, dtype=jnp.float32)
        fx = (jnp.pi / (2.0 * self.w)) * jx
        grid_x = jnp.where(jnp.arange(self.w) % 2 == 0, jnp.sin(fx), jnp.cos(fx))  # (W,)

        jy = jnp.arange(self.h, dtype=jnp.float32)
        fy = (jnp.pi / (2.0 * self.h)) * jy
        grid_y = jnp.where(jnp.arange(self.h) % 2 == 0, jnp.sin(fy), jnp.cos(fy))  # (H,)

        pos_x = jnp.broadcast_to(grid_x[None, :], (self.h, self.w))   # rows constant
        pos_y = jnp.broadcast_to(grid_y[:, None], (self.h, self.w))   # cols constant
        hw = self.h * self.w
        # Fused constant: channel 0 = pos_x, channel 1 = pos_y (cat order in torch).
        self.pos_xy = (jnp.stack([pos_x, pos_y], axis=0)
                       .reshape(1, 2, hw).astype(dtype))

    def __call__(self, x):
        return posembed_forward(x, self.pos_xy)


# --------------------------------- main --------------------------------------
if __name__ == "__main__":
    B, C, H, W = 2, 4, 16, 16
    key = jax.random.PRNGKey(0)
    x = jax.random.normal(key, (B, C, H, W), jnp.float32)

    mod = PosEmbed((H, W), batch_size=B)
    fwd = jax.jit(mod.__call__)
    y = fwd(x)
    jax.block_until_ready(y)

    # Plain-JAX reference (identical to torch.cat((x, pos_x, pos_y), dim=1)).
    pxy4 = mod.pos_xy.reshape(1, 2, H, W)
    ref = jnp.concatenate([x, jnp.broadcast_to(pxy4, (B, 2, H, W))], axis=1)

    assert y.shape == (B, C + 2, H, W)
    assert y.dtype == jnp.float32
    assert jnp.array_equal(y, ref), "mismatch vs reference concat"
    print("KERNEL_OK")
</pallas_src>

<mosaic_0001>
module attributes {stable_mosaic.version = 11 : i64} {
  func.func @_posembed_concat_kernel(%arg0: i32, %arg1: i32, %arg2: memref<2x4x256xf32, #tpu.memory_space<vmem>>, %arg3: memref<1x2x256xf32, #tpu.memory_space<vmem>>, %arg4: memref<2x6x256xf32, #tpu.memory_space<vmem>>) attributes {dimension_semantics = [#tpu.dimension_semantics<parallel>, #tpu.dimension_semantics<parallel>], iteration_bounds = array<i64: 1, 1>, scalar_prefetch = 0 : i64, scratch_operands = 0 : i64, tpu.core_type = #tpu.core_type<tc>, window_params = [{transform_indices = @transform_0, window_bounds = array<i64: 2, 4, 256>}, {transform_indices = @transform_1, window_bounds = array<i64: 1, 2, 256>}, {transform_indices = @transform_2, window_bounds = array<i64: 2, 6, 256>}]} {
    %c0 = arith.constant 0 : index
    %c0_0 = arith.constant 0 : index
    %c0_1 = arith.constant 0 : index
    %0 = vector.load %arg2[%c0, %c0_0, %c0_1] : memref<2x4x256xf32, #tpu.memory_space<vmem>>, vector<2x4x256xf32>
    %c0_2 = arith.constant 0 : index
    %c0_3 = arith.constant 0 : index
    %c0_4 = arith.constant 0 : index
    %1 = vector.load %arg4[%c0_2, %c0_3, %c0_4] : memref<2x6x256xf32, #tpu.memory_space<vmem>>, vector<2x4x256xf32>
    tpu.vector_store %arg4[%c0_2, %c0_3, %c0_4], %0 {strides = array<i32>} : memref<2x6x256xf32, #tpu.memory_space<vmem>>, vector<2x4x256xf32>,
    %c0_5 = arith.constant 0 : index
    %c0_6 = arith.constant 0 : index
    %c0_7 = arith.constant 0 : index
    %2 = vector.load %arg3[%c0_5, %c0_6, %c0_7] : memref<1x2x256xf32, #tpu.memory_space<vmem>>, vector<1x2x256xf32>
    %3 = vector.shape_cast %2 : vector<1x2x256xf32> to vector<1x2x256xf32>
    %4 = vector.broadcast %3 : vector<1x2x256xf32> to vector<2x2x256xf32>
    %c0_8 = arith.constant 0 : index
    %c4 = arith.constant 4 : index
    %c0_9 = arith.constant 0 : index
    %5 = vector.load %arg4[%c0_8, %c4, %c0_9] : memref<2x6x256xf32, #tpu.memory_space<vmem>>, vector<2x2x256xf32>
    tpu.vector_store %arg4[%c0_8, %c4, %c0_9], %4 {strides = array<i32>} : memref<2x6x256xf32, #tpu.memory_space<vmem>>, vector<2x2x256xf32>,
    return
  }
  func.func @transform_0(%arg0: i32, %arg1: i32) -> (i32, i32, i32) {
    %c0_i32 = arith.constant 0 : i32
    %c0_i32_0 = arith.constant 0 : i32
    return %arg0, %c0_i32, %arg1 : i32, i32, i32
  }
  func.func @transform_1(%arg0: i32, %arg1: i32) -> (i32, i32, i32) {
    %c0_i32 = arith.constant 0 : i32
    %c0_i32_0 = arith.constant 0 : i32
    %c0_i32_1 = arith.constant 0 : i32
    return %c0_i32, %c0_i32_0, %arg1 : i32, i32, i32
  }
  func.func @transform_2(%arg0: i32, %arg1: i32) -> (i32, i32, i32) {
    %c0_i32 = arith.constant 0 : i32
    %c0_i32_0 = arith.constant 0 : i32
    return %arg0, %c0_i32, %arg1 : i32, i32, i32
  }
}

</mosaic_0001>

<llo_original>
// kernel: a_call__.1
$region0: #{a_call__.1}
  #allocation0 [shape = 'u32[]', space=smem, size = 0x4, offset = 0x4, fixed_abs, tag = 'smem constant byte address 0x4 - core index']
  #allocation1 [shape = 'u32[144,128]{1,0:T(1,128)}', space=vmem, size = 0x12000, scoped, tag = 'internal scratch']
  %s0 = inlined_call_operand.vmem [shape: f32[2,4,256], index: 0, kind: input, shape index: {}]
  %s1 = inlined_call_operand.vmem [shape: f32[1,2,256], index: 1, kind: input, shape index: {}]
  %s2 = inlined_call_operand.vmem [shape: f32[2,6,256], index: 2, kind: output, shape index: {}]
  %s3 = sld [smem:[#allocation0]]
  $region18: #{a_call__.1} parent=0
    _
  %s5 = ssub.s32 1, %s3
  %s6 = scalar_select 0, %s5, %s3
  // Predicated region
  $region2: #{a_call__.1} parent=0 // pred_check
    _
  $region3: #{a_call__.1} parent=0 // pred_check_branch
    %8 = sbr.rel (0) target = $region5
  $region4: #{a_call__.1} parent=0 // pred_region
    _
  $region5: #{a_call__.1} parent=0 // pred_fallthru
    _
  // Predicated region
  $region6: #{a_call__.1} parent=0 // pred_check
    _
  $region7: #{a_call__.1} parent=0 // pred_check_branch
    %10 = sbr.rel (0) target = $region9
  $region8: #{a_call__.1} parent=0 // pred_region
    _
  $region9: #{a_call__.1} parent=0 // pred_fallthru
    _
  %v11 = vld [vmem:[%s0] sm:$0xff]
  %v12 = vld [vmem:[%s0 + $0x8] sm:$0xff]
  %v15 = vcombine.high %v11, %v11
  %v16 = vcombine.high %v12, %v12
  %19 = vst [vmem:[%s2] sm:$0xf] %v11
  %20 = vst [vmem:[%s2 + $0x8] sm:$0xf] %v15
  %21 = vst [vmem:[%s2 + $0x10] sm:$0xf] %v12
  %22 = vst [vmem:[%s2 + $0x18] sm:$0xf] %v16
  %v23 = vld [vmem:[%s1] sm:$0xf]
  %v26 = vunpack.c.l.s4 1983009808
  %v27 = vunpack.c.0.s8 %v26
  %v28 = vlaneseq
  %v29 = vshrl.u32 %v28, 7
  %v30 = vsub.s32 %v27, %v29
  %v31 = vrot.slane %v23, %v30
  %v32 = vcombine.low %v31, %v31
  %35 = vst [vmem:[%s2] sm:$0x30] %v32
  %36 = vst [vmem:[%s2 + $0x8] sm:$0x30] %v31
  %37 = vst [vmem:[%s2 + $0x10] sm:$0x30] %v32
  %38 = vst [vmem:[%s2 + $0x18] sm:$0x30] %v31
  // Predicated region
  $region10: #{a_call__.1} parent=0 // pred_check
    _
  $region11: #{a_call__.1} parent=0 // pred_check_branch
    %40 = sbr.rel (0) target = $region13
  $region12: #{a_call__.1} parent=0 // pred_region
    _
  $region13: #{a_call__.1} parent=0 // pred_fallthru
    _
  // Predicated region
  $region14: #{a_call__.1} parent=0 // pred_check
    _
  $region15: #{a_call__.1} parent=0 // pred_check_branch
    %42 = sbr.rel (0) target = $region17
  $region16: #{a_call__.1} parent=0 // pred_region
    _
  $region17: #{a_call__.1} parent=0 // pred_fallthru
    _

</llo_original>
